<compile_context>
chip_gen: v7x
topology: tpu7x:2x2x1
jax: 0.10.0
libtpu: 0.0.40
codegen_flags: <defaults>
</compile_context>

<pallas_src>
import functools

import jax
import jax.numpy as jnp
from jax import lax
from jax.experimental import pallas as pl
from jax.experimental.pallas import tpu as pltpu


# ---------------------------------------------------------------------------
# Shared per-row math
# ---------------------------------------------------------------------------
def _row_mean_var(f, n_valid, needs_lane_mask):
    """Mean + unbiased variance over the last (lane) axis of an f32 tile.

    Two-pass centered variance (numerically robust). Padded lanes are zeros,
    which do not perturb the sum; they are masked out of the centered pass.
    """
    inv_n = 1.0 / float(n_valid)
    inv_nm1 = 1.0 / float(n_valid - 1)          # PyTorch .var(dim=2) is unbiased.
    mean = jnp.sum(f, axis=-1, keepdims=True) * inv_n
    d = f - mean
    if needs_lane_mask:
        lane = lax.broadcasted_iota(jnp.int32, f.shape, f.ndim - 1)
        d = jnp.where(lane < n_valid, d, 0.0)
    var = jnp.sum(d * d, axis=-1, keepdims=True) * inv_nm1
    return mean, var


def _mix_affine(c_mean, c_var, s_mean, s_var, lam, eps):
    """Fold normalization + style mixing into a per-channel affine.

    out = (c - c_mean)/c_std * mix_std + mix_mean  ==  c * scale + bias
    Only tiny (.., 1)-shaped stats touch sqrt/rsqrt (EUP path).
    """
    inv_c_std = lax.rsqrt(c_var + eps)           # EUP
    c_std = (c_var + eps) * inv_c_std            # sqrt(c_var + eps) without 2nd sqrt
    s_std = jnp.sqrt(s_var + eps)
    mix_std = lam * s_std + (1.0 - lam) * c_std
    mix_mean = lam * s_mean + (1.0 - lam) * c_mean
    scale = mix_std * inv_c_std
    bias = mix_mean - c_mean * scale
    return scale, bias


# ---------------------------------------------------------------------------
# Kernels
# ---------------------------------------------------------------------------
def _smm_resident_kernel(perm_ref, x_ref, out_ref, *,
                         lam, eps, n_valid, needs_lane_mask, n_batch):
    """Fully VMEM-resident variant: x read from HBM once, written once.

    x_ref/out_ref: whole (N, C, HWp) arrays in VMEM. perm_ref: (N,) in SMEM.
    """
    def body(n, carry):
        c = x_ref[n].astype(jnp.float32)                  # (C, HWp)
        s = x_ref[perm_ref[n]].astype(jnp.float32)        # VMEM gather, no HBM cost
        c_mean, c_var = _row_mean_var(c, n_valid, needs_lane_mask)
        s_mean, s_var = _row_mean_var(s, n_valid, needs_lane_mask)
        scale, bias = _mix_affine(c_mean, c_var, s_mean, s_var, lam, eps)
        out_ref[n] = (c * scale + bias).astype(out_ref.dtype)
        return carry

    lax.fori_loop(0, n_batch, body, 0)


def _smm_tiled_kernel(perm_ref, content_ref, style_ref, out_ref, *,
                      lam, eps, n_valid, needs_lane_mask):
    """Tiled variant: (1, tc, HWp) blocks; spatial axis never tiled."""
    c = content_ref[...].astype(jnp.float32)
    s = style_ref[...].astype(jnp.float32)
    c_mean, c_var = _row_mean_var(c, n_valid, needs_lane_mask)
    s_mean, s_var = _row_mean_var(s, n_valid, needs_lane_mask)
    scale, bias = _mix_affine(c_mean, c_var, s_mean, s_var, lam, eps)
    out_ref[...] = (c * scale + bias).astype(out_ref.dtype)


# ---------------------------------------------------------------------------
# Wrapper helpers
# ---------------------------------------------------------------------------
def _vmem_capacity_bytes():
    try:
        info = pltpu.get_tpu_info()
        cap = int(getattr(info, "vmem_capacity_bytes", 0))
        if cap > 0:
            return cap
    except Exception:
        pass
    return 64 * 1024 * 1024          # conservative: v7x per-TensorCore VMEM


def _sublane_pack(itemsize):
    # Sub-32-bit dtypes pack along sublanes: keep channel tiles dense.
    return {1: 32, 2: 16, 4: 8}.get(int(itemsize), 8)


def _pick_channel_tile(C, hw_pad, itemsize, vmem_budget):
    """Largest sublane-aligned channel tile whose per-step footprint fits.

    Per-step footprint: 3 streams x 2 pipeline buffers x tile bytes plus ~4
    f32 temporaries materialized in-kernel (casts + centered diff).
    """
    pack = _sublane_pack(itemsize)
    per_channel = hw_pad * (6 * itemsize + 4 * 4)
    tc_fit = vmem_budget // max(per_channel, 1)
    # ~8 MiB blocks already saturate HBM; larger only shrinks the grid.
    tc_target = (8 * 1024 * 1024) // max(hw_pad * itemsize, 1)
    c_ceil = -(-C // pack) * pack
    tc = min(tc_fit, tc_target, c_ceil)
    tc = max(pack, (tc // pack) * pack)
    return tc, pack


# ---------------------------------------------------------------------------
# Public entry point
# ---------------------------------------------------------------------------
def smm_block(x, perm, lam=0.5, eps=1e-5):
    """Pallas forward of SMMBlock (rand=False).

    x: (N, C, H, W); perm: int (N,) batch permutation (torch.randperm analog).
    Returns (mixed_feat, batch_indices).
    """
    N, C, H, W = x.shape
    HW = H * W
    assert HW > 1, "unbiased variance requires H*W > 1"

    perm = jnp.clip(perm.astype(jnp.int32), 0, N - 1)   # bounds-safe gather index

    # Lane-dense layout: spatial -> lane axis, padded to a 128 multiple so all
    # stores/DMAs are unmasked (biggest measured layout lever for small maps).
    hw_pad = -(-HW // 128) * 128
    x2 = x.reshape(N, C, HW)
    if hw_pad != HW:
        x2 = jnp.pad(x2, ((0, 0), (0, 0), (0, hw_pad - HW)))
    needs_lane_mask = hw_pad != HW

    itemsize = jnp.dtype(x.dtype).itemsize
    vmem_cap = _vmem_capacity_bytes()
    total_bytes = N * C * hw_pad * itemsize

    common = dict(lam=float(lam), eps=float(eps),
                  n_valid=int(HW), needs_lane_mask=needs_lane_mask)
    flops = 10 * N * C * HW                 # advisory: reduces + affine, 2 streams
    transcendentals = 4 * N * C             # rsqrt/sqrt on per-(N,C) stats

    # Resident-path gate: in + out buffers (single-buffered, memory_space=VMEM)
    # plus per-row f32 temporaries, with headroom.
    resident_need = 2 * total_bytes + 6 * C * hw_pad * 4
    if resident_need <= int(0.7 * vmem_cap):
        # ---- fully VMEM-resident single invocation: 1x read + 1x write ----
        kernel = functools.partial(_smm_resident_kernel, n_batch=N, **common)
        mixed = pl.pallas_call(
            kernel,
            out_shape=jax.ShapeDtypeStruct((N, C, hw_pad), x.dtype),
            grid_spec=pltpu.PrefetchScalarGridSpec(
                num_scalar_prefetch=1,
                grid=(1,),
                in_specs=[pl.BlockSpec(memory_space=pltpu.MemorySpace.VMEM)],
                out_specs=pl.BlockSpec(memory_space=pltpu.MemorySpace.VMEM),
            ),
            compiler_params=pltpu.CompilerParams(
                dimension_semantics=("arbitrary",),
                vmem_limit_bytes=int(0.9 * vmem_cap),
            ),
            cost_estimate=pl.CostEstimate(
                flops=flops, transcendentals=transcendentals,
                bytes_accessed=2 * total_bytes),
        )(perm, x2)
    else:
        # ---- tiled path: grid over (sample, channel tile); spatial untiled ----
        tc, pack = _pick_channel_tile(C, hw_pad, itemsize, int(0.6 * vmem_cap))
        n_ctiles = (C + tc - 1) // tc
        # Megacore balance: make sure both v7x TensorCores get work.
        if N * n_ctiles < 2 and tc > pack:
            tc = max(pack, ((tc // 2) // pack) * pack)
            n_ctiles = (C + tc - 1) // tc
        grid = (N, n_ctiles)
        # TODO(synk): add an inner "arbitrary" HW grid axis (sum/sumsq or
        # Welford accumulators in VMEM scratch, finalized via pl.when) for
        # feature maps too large for even a pack-wide channel tile.

        kernel = functools.partial(_smm_tiled_kernel, **common)
        mixed = pl.pallas_call(
            kernel,
            out_shape=jax.ShapeDtypeStruct((N, C, hw_pad), x.dtype),
            grid_spec=pltpu.PrefetchScalarGridSpec(
                num_scalar_prefetch=1,
                grid=grid,
                in_specs=[
                    # content: sample n, channel tile c
                    pl.BlockSpec((1, tc, hw_pad), lambda n, c, perm: (n, c, 0)),
                    # style: sample perm[n] (data-dependent gather via SMEM prefetch)
                    pl.BlockSpec((1, tc, hw_pad), lambda n, c, perm: (perm[n], c, 0)),
                ],
                out_specs=pl.BlockSpec((1, tc, hw_pad), lambda n, c, perm: (n, c, 0)),
            ),
            compiler_params=pltpu.CompilerParams(
                dimension_semantics=("parallel", "parallel"),
                vmem_limit_bytes=int(0.75 * vmem_cap),
            ),
            cost_estimate=pl.CostEstimate(
                flops=flops, transcendentals=transcendentals,
                bytes_accessed=3 * total_bytes),
        )(perm, x2, x2)

    if hw_pad != HW:
        mixed = mixed[..., :HW]
    return mixed.reshape(N, C, H, W), perm


# ---------------------------------------------------------------------------
# Pure-JAX reference (mirrors the PyTorch code, unbiased variance)
# ---------------------------------------------------------------------------
def _reference(x, perm, lam=0.5, eps=1e-5):
    def mean_std(f):
        N, C = f.shape[:2]
        flat = f.reshape(N, C, -1)
        m = jnp.mean(flat, axis=2)
        var = jnp.var(flat, axis=2, ddof=1) + eps
        return m[:, :, None, None], jnp.sqrt(var)[:, :, None, None]

    style = x[perm]
    s_mean, s_std = mean_std(style)
    c_mean, c_std = mean_std(x)
    normalized = (x - c_mean) / c_std
    mix_std = lam * s_std + (1 - lam) * c_std
    mix_mean = lam * s_mean + (1 - lam) * c_mean
    return normalized * mix_std + mix_mean


if __name__ == "__main__":
    key = jax.random.PRNGKey(0)
    kx, kp = jax.random.split(key)

    N, C, H, W = 2, 4, 16, 16
    x = jax.random.normal(kx, (N, C, H, W), dtype=jnp.float32)
    # SMMBlock uses torch.randperm; reproduce deterministically with JAX PRNG.
    perm = jax.random.permutation(kp, N).astype(jnp.int32)

    mixed, batch_indices = smm_block(x, perm, lam=0.5)
    mixed = jax.block_until_ready(mixed)

    ref = _reference(x, perm, lam=0.5)
    assert jnp.allclose(mixed, ref, atol=1e-4, rtol=1e-4), "mismatch vs reference"
    assert batch_indices.shape == (N,)

    print("KERNEL_OK")
</pallas_src>

<mosaic_0001>
module attributes {stable_mosaic.version = 11 : i64} {
  func.func @_smm_resident_kernel(%arg0: i32, %arg1: memref<2xi32, #tpu.memory_space<smem>>, %arg2: memref<2x4x256xf32, #tpu.memory_space<vmem>>, %arg3: memref<2x4x256xf32, #tpu.memory_space<vmem>>) attributes {dimension_semantics = [#tpu.dimension_semantics<arbitrary>], iteration_bounds = array<i64: 1>, scalar_prefetch = 1 : i64, scratch_operands = 0 : i64, tpu.core_type = #tpu.core_type<tc>, window_params = [{pipeline_mode = #tpu.pipeline_mode<synchronous>, transform_indices = @transform_0, window_bounds = array<i64: 2, 4, 256>}, {pipeline_mode = #tpu.pipeline_mode<synchronous>, transform_indices = @transform_1, window_bounds = array<i64: 2, 4, 256>}]} {
    %c0_i32 = arith.constant 0 : i32
    %c2_i32 = arith.constant 2 : i32
    %0 = arith.addi %c0_i32, %c2_i32 : i32
    %c1_i32 = arith.constant 1 : i32
    scf.for %arg4 = %c0_i32 to %0 step %c1_i32  : i32 {
      %1 = arith.index_cast %arg4 : i32 to index
      %c0 = arith.constant 0 : index
      %c0_1 = arith.constant 0 : index
      %2 = vector.load %arg2[%1, %c0, %c0_1] : memref<2x4x256xf32, #tpu.memory_space<vmem>>, vector<1x4x256xf32>
      %3 = vector.shape_cast %2 : vector<1x4x256xf32> to vector<4x256xf32>
      %4 = arith.index_cast %arg4 : i32 to index
      %5 = memref.load %arg1[%4] : memref<2xi32, #tpu.memory_space<smem>>
      %6 = arith.index_cast %5 : i32 to index
      %c0_2 = arith.constant 0 : index
      %c0_3 = arith.constant 0 : index
      %7 = vector.load %arg2[%6, %c0_2, %c0_3] : memref<2x4x256xf32, #tpu.memory_space<vmem>>, vector<1x4x256xf32>
      %8 = vector.shape_cast %7 : vector<1x4x256xf32> to vector<4x256xf32>
      %cst = arith.constant dense<0.000000e+00> : vector<4xf32>
      %9 = vector.multi_reduction <add>, %3, %cst [1] : vector<4x256xf32> to vector<4xf32>
      %10 = vector.shape_cast %9 : vector<4xf32> to vector<4x1xf32>
      %cst_4 = arith.constant 3.906250e-03 : f32
      %11 = vector.broadcast %cst_4 : f32 to vector<4x1xf32>
      %12 = arith.mulf %10, %11 : vector<4x1xf32>
      %13 = vector.broadcast %12 : vector<4x1xf32> to vector<4x256xf32>
      %14 = arith.subf %3, %13 : vector<4x256xf32>
      %15 = arith.mulf %14, %14 : vector<4x256xf32>
      %cst_5 = arith.constant dense<0.000000e+00> : vector<4xf32>
      %16 = vector.multi_reduction <add>, %15, %cst_5 [1] : vector<4x256xf32> to vector<4xf32>
      %17 = vector.shape_cast %16 : vector<4xf32> to vector<4x1xf32>
      %cst_6 = arith.constant 0.00392156886 : f32
      %18 = vector.broadcast %cst_6 : f32 to vector<4x1xf32>
      %19 = arith.mulf %17, %18 : vector<4x1xf32>
      %cst_7 = arith.constant dense<0.000000e+00> : vector<4xf32>
      %20 = vector.multi_reduction <add>, %8, %cst_7 [1] : vector<4x256xf32> to vector<4xf32>
      %21 = vector.shape_cast %20 : vector<4xf32> to vector<4x1xf32>
      %cst_8 = arith.constant 3.906250e-03 : f32
      %22 = vector.broadcast %cst_8 : f32 to vector<4x1xf32>
      %23 = arith.mulf %21, %22 : vector<4x1xf32>
      %24 = vector.broadcast %23 : vector<4x1xf32> to vector<4x256xf32>
      %25 = arith.subf %8, %24 : vector<4x256xf32>
      %26 = arith.mulf %25, %25 : vector<4x256xf32>
      %cst_9 = arith.constant dense<0.000000e+00> : vector<4xf32>
      %27 = vector.multi_reduction <add>, %26, %cst_9 [1] : vector<4x256xf32> to vector<4xf32>
      %28 = vector.shape_cast %27 : vector<4xf32> to vector<4x1xf32>
      %cst_10 = arith.constant 0.00392156886 : f32
      %29 = vector.broadcast %cst_10 : f32 to vector<4x1xf32>
      %30 = arith.mulf %28, %29 : vector<4x1xf32>
      %cst_11 = arith.constant 9.99999974E-6 : f32
      %31 = vector.broadcast %cst_11 : f32 to vector<4x1xf32>
      %32 = arith.addf %19, %31 : vector<4x1xf32>
      %33 = math.rsqrt %32 : vector<4x1xf32>
      %cst_12 = arith.constant 9.99999974E-6 : f32
      %34 = vector.broadcast %cst_12 : f32 to vector<4x1xf32>
      %35 = arith.addf %19, %34 : vector<4x1xf32>
      %36 = arith.mulf %35, %33 : vector<4x1xf32>
      %cst_13 = arith.constant 9.99999974E-6 : f32
      %37 = vector.broadcast %cst_13 : f32 to vector<4x1xf32>
      %38 = arith.addf %30, %37 : vector<4x1xf32>
      %39 = math.sqrt %38 : vector<4x1xf32>
      %cst_14 = arith.constant 5.000000e-01 : f32
      %40 = vector.broadcast %cst_14 : f32 to vector<4x1xf32>
      %41 = arith.mulf %40, %39 : vector<4x1xf32>
      %cst_15 = arith.constant 5.000000e-01 : f32
      %42 = vector.broadcast %cst_15 : f32 to vector<4x1xf32>
      %43 = arith.mulf %42, %36 : vector<4x1xf32>
      %44 = arith.addf %41, %43 : vector<4x1xf32>
      %cst_16 = arith.constant 5.000000e-01 : f32
      %45 = vector.broadcast %cst_16 : f32 to vector<4x1xf32>
      %46 = arith.mulf %45, %23 : vector<4x1xf32>
      %cst_17 = arith.constant 5.000000e-01 : f32
      %47 = vector.broadcast %cst_17 : f32 to vector<4x1xf32>
      %48 = arith.mulf %47, %12 : vector<4x1xf32>
      %49 = arith.addf %46, %48 : vector<4x1xf32>
      %50 = arith.mulf %44, %33 : vector<4x1xf32>
      %51 = arith.mulf %12, %50 : vector<4x1xf32>
      %52 = arith.subf %49, %51 : vector<4x1xf32>
      %53 = vector.broadcast %50 : vector<4x1xf32> to vector<4x256xf32>
      %54 = arith.mulf %3, %53 : vector<4x256xf32>
      %55 = vector.broadcast %52 : vector<4x1xf32> to vector<4x256xf32>
      %56 = arith.addf %54, %55 : vector<4x256xf32>
      %57 = arith.index_cast %arg4 : i32 to index
      %c0_18 = arith.constant 0 : index
      %c0_19 = arith.constant 0 : index
      %58 = vector.load %arg3[%57, %c0_18, %c0_19] : memref<2x4x256xf32, #tpu.memory_space<vmem>>, vector<1x4x256xf32>
      %59 = vector.shape_cast %58 : vector<1x4x256xf32> to vector<4x256xf32>
      %60 = vector.shape_cast %56 : vector<4x256xf32> to vector<1x4x256xf32>
      tpu.vector_store %arg3[%57, %c0_18, %c0_19], %60 {strides = array<i32>} : memref<2x4x256xf32, #tpu.memory_space<vmem>>, vector<1x4x256xf32>,
    }
    %c2_i32_0 = arith.constant 2 : i32
    return
  }
  func.func @transform_0(%arg0: i32, %arg1: memref<2xi32, #tpu.memory_space<smem>>) -> (i32, i32, i32) {
    %c0_i32 = arith.constant 0 : i32
    %c0_i32_0 = arith.constant 0 : i32
    %c0_i32_1 = arith.constant 0 : i32
    %c0_i32_2 = arith.constant 0 : i32
    return %c0_i32, %c0_i32_0, %c0_i32_1 : i32, i32, i32
  }
  func.func @transform_1(%arg0: i32, %arg1: memref<2xi32, #tpu.memory_space<smem>>) -> (i32, i32, i32) {
    %c0_i32 = arith.constant 0 : i32
    %c0_i32_0 = arith.constant 0 : i32
    %c0_i32_1 = arith.constant 0 : i32
    %c0_i32_2 = arith.constant 0 : i32
    return %c0_i32, %c0_i32_0, %c0_i32_1 : i32, i32, i32
  }
}

</mosaic_0001>

<llo_original>
// kernel: tpu_custom_call.1
$region0: #{tpu_custom_call.1}
  #allocation0 [shape = 'u32[]', space=smem, size = 0x4, offset = 0x4, fixed_abs, tag = 'smem constant byte address 0x4 - core index']
  #allocation1 [shape = 'u32[144,128]{1,0:T(1,128)}', space=vmem, size = 0x12000, scoped, tag = 'internal scratch']
  #allocation2 [shape = 's32[1]{0}', space=sflag, size = 0x4, scoped, tag = 'scoped memory for tpu_custom_call.1']
  #allocation3 [shape = 'u8[512]{0}', space=smem, size = 0x200, scoped, tag = 'prefetched SMEM operand 0']
  %s0 = inlined_call_operand.hbm [shape: s32[2], index: 0, kind: input, shape index: {}]
  %s1 = inlined_call_operand.hbm [shape: f32[2,4,256], index: 1, kind: input, shape index: {}]
  %s2 = inlined_call_operand.hbm [shape: f32[2,4,256], index: 2, kind: output, shape index: {}]
  %s3 = sld [smem:[#allocation0]]
  $region25: #{tpu_custom_call.1} parent=0
    _
  %s5 = ssub.s32 1, %s3
  %s6 = scalar_select 0, %s5, %s3
  %8 = dma.hbm_to_smem %s0, 16, [#allocation3], [#allocation2]
  %9 = dma.done [#allocation2], 16
  %10 = sfence
  $region1: #{tpu_custom_call.1} parent=0
    #allocation4 [shape = 'u8[8192]{0}', space=vmem, size = 0x2000, scoped, tag = 'input window, operand 1, single buffered']
    #allocation5 [shape = 's32[1]{0}', space=sflag, size = 0x4, scoped, tag = 'scoped memory for tpu_custom_call.1']
    #allocation6 [shape = 's32[1]{0}', space=sflag, size = 0x4, scoped, tag = 'scoped memory for tpu_custom_call.1']
    #allocation7 [shape = 'u8[8192]{0}', space=vmem, size = 0x2000, scoped, tag = 'output window, operand 0, single buffered']
    %11 = vsyncpa [#allocation5], 0
    %12 = vsyncpa [#allocation6], 0
    // Predicated region
    $region2: #{tpu_custom_call.1} parent=1 // pred_check
      _
    $region3: #{tpu_custom_call.1} parent=1 // pred_check_branch
      %14 = sbr.rel (0) target = $region5
    $region4: #{tpu_custom_call.1} parent=1 // pred_region
      %s16 = ssub.s32 256, 256
      %17 = vsyncadd [#allocation5], %s16
      %s18 = sshll.u32 [#allocation4], 4
      %s19 = int_to_ptr.vmem [resolvable:$true] %s18
      %24 = dma.hbm_to_vmem [thread:$0]  %s1, 256, %s19, [#allocation5], 128, 128, 8
    $region5: #{tpu_custom_call.1} parent=1 // pred_fallthru
      _
    // Predicated region
    $region6: #{tpu_custom_call.1} parent=1 // pred_check
      _
    $region7: #{tpu_custom_call.1} parent=1 // pred_check_branch
      %26 = sbr.rel (0) target = $region9
    $region8: #{tpu_custom_call.1} parent=1 // pred_region
      %27 = dma.done [#allocation5], 256
    $region9: #{tpu_custom_call.1} parent=1 // pred_fallthru
      _
    loop: start=0, step=1, limit=2
    $region10: #{tpu_custom_call.1} parent=1 // loop_pre_header
      _
    $region11: #{tpu_custom_call.1} parent=1 // loop_header
      %s29 = sphi 0, %s33
      %p30 = scmp.ge.s32.totalorder %s29, 2
    $region12: #{tpu_custom_call.1} parent=1 // loop_header_branch
      %32 = sbr.rel (%p30) target = $region16
    $region13: #{tpu_custom_call.1} parent=1 // loop_body
      %s34 = smul.u32 %s29, 2
      %s35 = smul.addr %s34, 4
      %s36 = scalar_lea.vmem [#allocation4], %s35
      %v37 = vld [vmem:[%s36] sm:$0xff]
      %s38 = sld [smem:[#allocation3 + %s29]]
      %s39 = smul.u32 %s38, 2
      %s40 = smul.addr %s39, 4
      %s41 = scalar_lea.vmem [#allocation4], %s40
      %v42 = vld [vmem:[%s41] sm:$0xff]
      %v44 = vcombine.high %v37, %v37
      %vm46 = vcmask 1043456
      %v47 = vsel %vm46, %v37, 0.0
      %v48 = vsel %vm46, %v44, 0.0
      %v49 = vadd.f32 %v47, %v48
      %50 = vadd.xlane.f32.xlu0 %v49
      %v51 = vpop.xlane.xlu0 %50
      %v52 = vmul.f32 %v51, 0.00390625
      %v55 = vunpack.c.l.s4 839922192
      %v56 = vunpack.c.0.s8 %v55
      %v57 = vlaneseq
      %v58 = vshrl.u32 %v57, 7
      %v59 = vsub.s32 %v56, %v58
      %v60 = vrot.slane %v52, %v59
      %v62 = vsub.f32 %v37, %v60
      %v63 = vmul.f32 %v62, %v62
      %v65 = vcombine.high %v63, %v63
      %v67 = vsel %vm46, %v63, 0.0
      %v68 = vsel %vm46, %v65, 0.0
      %v69 = vadd.f32 %v67, %v68
      %70 = vadd.xlane.f32.xlu0 %v69
      %v71 = vpop.xlane.xlu0 %70
      %v72 = vmul.f32 %v71, 0.003921569
      %v74 = vcombine.high %v42, %v42
      %v76 = vsel %vm46, %v42, 0.0
      %v77 = vsel %vm46, %v74, 0.0
      %v78 = vadd.f32 %v76, %v77
      %79 = vadd.xlane.f32.xlu0 %v78
      %v80 = vpop.xlane.xlu0 %79
      %v81 = vmul.f32 %v80, 0.00390625
      %v84 = vunpack.c.l.s4 839922192
      %v85 = vunpack.c.0.s8 %v84
      %v86 = vlaneseq
      %v87 = vshrl.u32 %v86, 7
      %v88 = vsub.s32 %v85, %v87
      %v89 = vrot.slane %v81, %v88
      %v91 = vsub.f32 %v42, %v89
      %v92 = vmul.f32 %v91, %v91
      %v94 = vcombine.high %v92, %v92
      %v96 = vsel %vm46, %v92, 0.0
      %v97 = vsel %vm46, %v94, 0.0
      %v98 = vadd.f32 %v96, %v97
      %99 = vadd.xlane.f32.xlu0 %v98
      %v100 = vpop.xlane.xlu0 %99
      %v101 = vmul.f32 %v100, 0.003921569
      %v102 = vadd.f32 %v72, 1e-05
      %v103 = vrsqrt.pop %v102
      %v104 = vmul.f32 %v102, %v103
      %v105 = vadd.f32 %v101, 1e-05
      %v106 = vrsqrt.pop %v105
      %v107 = vmul.f32 %v105, %v106
      %vm108 = vcmp.eq.f32.partialorder %v105, inf
      %v109 = vsel %vm108, %v105, %v107
      %vm110 = vcmp.eq.f32.partialorder %v105, 0.0
      %v111 = vand.u32 %v105, 2147483648
      %v112 = vsel %vm110, %v111, %v109
      %v113 = vmul.f32 %v112, 0.5
      %v114 = vmul.f32 %v104, 0.5
      %v115 = vadd.f32 %v113, %v114
      %v116 = vmul.f32 %v81, 0.5
      %v117 = vmul.f32 %v52, 0.5
      %v118 = vadd.f32 %v116, %v117
      %v119 = vmul.f32 %v115, %v103
      %v120 = vmul.f32 %v52, %v119
      %v121 = vsub.f32 %v118, %v120
      %v124 = vunpack.c.l.s4 839922192
      %v125 = vunpack.c.0.s8 %v124
      %v126 = vlaneseq
      %v127 = vshrl.u32 %v126, 7
      %v128 = vsub.s32 %v125, %v127
      %v129 = vrot.slane %v119, %v128
      %v131 = vmul.f32 %v37, %v129
      %v134 = vunpack.c.l.s4 839922192
      %v135 = vunpack.c.0.s8 %v134
      %v136 = vlaneseq
      %v137 = vshrl.u32 %v136, 7
      %v138 = vsub.s32 %v135, %v137
      %v139 = vrot.slane %v121, %v138
      %v141 = vadd.f32 %v131, %v139
      %s142 = smul.addr %s34, 4
      %s143 = scalar_lea.vmem [#allocation7], %s142
      %144 = vst [vmem:[%s143] sm:$0xff] %v141
    $region14: #{tpu_custom_call.1} parent=1 // loop_footer
      %s33 = sadd.s32 1, %s29
    $region15: #{tpu_custom_call.1} parent=1 // loop_footer_branch
      %28 = sbr.rel target = $region11
    $region16: #{tpu_custom_call.1} parent=1 // loop_exit
      _
    // Predicated region
    $region17: #{tpu_custom_call.1} parent=1 // pred_check
      _
    $region18: #{tpu_custom_call.1} parent=1 // pred_check_branch
      %146 = sbr.rel (0) target = $region20
    $region19: #{tpu_custom_call.1} parent=1 // pred_region
      %s148 = ssub.s32 256, 256
      %149 = vsyncadd [#allocation6], %s148
      %s150 = sshll.u32 [#allocation7], 4
      %s151 = int_to_ptr.vmem [resolvable:$true] %s150
      %156 = dma.vmem_to_hbm [thread:$0]  %s151, 256, %s2, [#allocation6], 128, 128, 8
    $region20: #{tpu_custom_call.1} parent=1 // pred_fallthru
      _
    // Predicated region
    $region21: #{tpu_custom_call.1} parent=1 // pred_check
      _
    $region22: #{tpu_custom_call.1} parent=1 // pred_check_branch
      %158 = sbr.rel (0) target = $region24
    $region23: #{tpu_custom_call.1} parent=1 // pred_region
      %159 = dma.done [#allocation6], 256
    $region24: #{tpu_custom_call.1} parent=1 // pred_fallthru
      _
    %160 = vsyncpa [#allocation5], 1
    %161 = vsyncpa [#allocation6], 1

</llo_original>
